<compile_context>
chip_gen: v5e
topology: v5e:2x2
jax: 0.10.0
libtpu: 0.0.40
codegen_flags: <defaults>
</compile_context>

<pallas_src>
import math

import jax
import jax.numpy as jnp
from jax.experimental import pallas as pl
from jax.experimental.pallas import tpu as pltpu


def _round_up(a, b):
    return (a + b - 1) // b * b


def _make_wavelet_kernel(K, L_out):
    """K and L_out are static Python ints."""

    def kernel(x_ref, psi_ref, o_ref):
        # x_ref  : (TR, L)     rows = fused (batch, channel), lanes = length
        # psi_ref: (TR, K)     per-row wavelet taps (precomputed in wrapper)
        # o_ref  : (TR, L_out) valid-conv output
        x = x_ref[...]
        psi = psi_ref[...]
        acc = x[:, 0:L_out] * psi[:, 0:1]
        for k in range(1, K):          # K small & static -> fully unrolled
            acc = acc + x[:, k:k + L_out] * psi[:, k:k + 1]
        o_ref[...] = acc.astype(o_ref.dtype)

    return kernel


def learnable_wavelet_layer(x, w, fc, kernel_size):
    """Forward of LearnableWaveletLayer (requires in_channels == 1).

    x : (N, C, L) float32 with C == out_channels
    w, fc : (C, 1) float32
    returns (N, C, L - kernel_size + 1)
    """
    N, C, L = x.shape
    K = int(kernel_size)
    L_out = L - K + 1
    assert L_out >= 1, "kernel_size must be <= input length"
    assert w.shape == (C, 1) and fc.shape == (C, 1), (w.shape, fc.shape)
    # TODO(synk): the PyTorch grouped conv is only shape-valid for
    # in_channels == 1; that case (depthwise valid conv) is what we implement.

    # --- psi.real hoisted out of the kernel (exp/cos done once by XLA) ---
    # n matches torch.arange(-K // 2, K // 2) incl. Python floor division.
    n = jnp.arange(-K // 2, K // 2, dtype=jnp.float32)                   # (K,)
    psi = (w * jnp.float32(1.0 / math.sqrt(math.pi))
           * jnp.exp(-(w * w) * (n * n))
           * jnp.cos(jnp.float32(2.0 * math.pi) * fc * n))               # (C, K)

    # --- fuse batch & channel into the sublane (row) axis ---
    R = N * C
    x_rows = x.reshape(R, L)            # contiguous reshape: free metadata op
    # Row r = n*C + c  ->  psi[c]. (R, K) is only R*K*4 bytes of extra HBM
    # (negligible vs R*L*4 bytes of x); keeps the kernel a simple 2-D slab.
    psi_rows = jnp.tile(psi, (N, 1))

    # --- row tiling: multiples of 8 sublanes, ~4 MiB input tile ---
    target_tile_bytes = 4 << 20
    rows_for_target = max(8, (target_tile_bytes // (4 * L)) // 8 * 8)
    TR = int(min(rows_for_target, _round_up(R, 8)))
    # Give the "parallel" grid >= 2 steps when there are enough rows so both
    # v7x TensorCores get work (no-op on v5e/v6e's single core).
    if R > 8 and pl.cdiv(R, TR) < 2:
        TR = max(8, _round_up(pl.cdiv(R, 2), 8))
    grid = (pl.cdiv(R, TR),)           # ragged tail row-block is masked by Pallas

    # VMEM limit from actual live (double-buffered) tiles + slack.
    lane = 128
    live_bytes = 2 * 4 * TR * (_round_up(L, lane)
                               + _round_up(L_out, lane)
                               + _round_up(K, lane))
    vmem_limit = int(min(max(live_bytes + (8 << 20), 16 << 20), 48 << 20))

    # TODO(synk): for very long L on v7x (64 MiB VMEM), add a second "parallel"
    # grid axis over the length with a K-1 input halo instead of relying on a
    # single (TR, L) slab per step.
    out = pl.pallas_call(
        _make_wavelet_kernel(K, L_out),
        out_shape=jax.ShapeDtypeStruct((R, L_out), x.dtype),
        grid=grid,
        in_specs=[
            pl.BlockSpec((TR, L), lambda i: (i, 0)),
            pl.BlockSpec((TR, K), lambda i: (i, 0)),
        ],
        out_specs=pl.BlockSpec((TR, L_out), lambda i: (i, 0)),
        compiler_params=pltpu.CompilerParams(
            dimension_semantics=("parallel",),
            vmem_limit_bytes=vmem_limit),
        cost_estimate=pl.CostEstimate(
            flops=2 * K * R * L_out,
            bytes_accessed=4 * (R * L + R * L_out + R * K),
            transcendentals=0),
    )(x_rows, psi_rows)

    return out.reshape(N, C, L_out)    # free metadata op


def _reference_forward(x, w, fc, kernel_size):
    """Pure-JAX reference mirroring the PyTorch forward (real part only)."""
    K = kernel_size
    C = w.shape[0]
    n = jnp.arange(-K // 2, K // 2, dtype=jnp.float32)
    psi_real = (w / jnp.sqrt(jnp.float32(math.pi))
                * jnp.exp(-(w ** 2) * (n ** 2))
                * jnp.cos(2.0 * math.pi * fc * n))            # (C, K)
    weight = psi_real[:, None, :]                              # (C, 1, K) "OIH"
    return jax.lax.conv_general_dilated(
        x, weight,
        window_strides=(1,), padding="VALID",
        dimension_numbers=("NCH", "OIH", "NCH"),
        feature_group_count=C)


if __name__ == "__main__":
    # Module config: in_channels must be 1 for the PyTorch forward to be valid.
    in_channels = 1
    out_channels = 4
    kernel_size = 5

    N, C, L = 2, out_channels, 16

    key = jax.random.PRNGKey(0)
    kx, kw, kf = jax.random.split(key, 3)
    x = jax.random.normal(kx, (N, C, L), dtype=jnp.float32)
    w = jax.random.normal(kw, (out_channels, 1), dtype=jnp.float32)   # nn.Parameter(randn)
    fc = jax.random.normal(kf, (out_channels, 1), dtype=jnp.float32)  # nn.Parameter(randn)

    out = jax.block_until_ready(learnable_wavelet_layer(x, w, fc, kernel_size))
    ref = jax.block_until_ready(_reference_forward(x, w, fc, kernel_size))

    assert out.shape == (N, C, L - kernel_size + 1), out.shape
    assert jnp.allclose(out, ref, atol=1e-5, rtol=1e-5), "mismatch vs reference"

    print("KERNEL_OK")
</pallas_src>

<mosaic_0001>
module attributes {stable_mosaic.version = 11 : i64} {
  func.func @kernel(%arg0: i32, %arg1: memref<8x16xf32, #tpu.memory_space<vmem>>, %arg2: memref<8x5xf32, #tpu.memory_space<vmem>>, %arg3: memref<8x12xf32, #tpu.memory_space<vmem>>) attributes {dimension_semantics = [#tpu.dimension_semantics<parallel>], iteration_bounds = array<i64: 1>, scalar_prefetch = 0 : i64, scratch_operands = 0 : i64, tpu.core_type = #tpu.core_type<tc>, window_params = [{transform_indices = @transform_0, window_bounds = array<i64: 8, 16>}, {transform_indices = @transform_1, window_bounds = array<i64: 8, 5>}, {transform_indices = @transform_2, window_bounds = array<i64: 8, 12>}]} {
    %c0 = arith.constant 0 : index
    %c0_0 = arith.constant 0 : index
    %0 = vector.load %arg1[%c0, %c0_0] : memref<8x16xf32, #tpu.memory_space<vmem>>, vector<8x16xf32>
    %c0_1 = arith.constant 0 : index
    %c0_2 = arith.constant 0 : index
    %1 = vector.load %arg2[%c0_1, %c0_2] : memref<8x5xf32, #tpu.memory_space<vmem>>, vector<8x5xf32>
    %2 = vector.extract_strided_slice %0 {offsets = [0, 0], sizes = [8, 12], strides = [1, 1]} : vector<8x16xf32> to vector<8x12xf32>
    %3 = vector.extract_strided_slice %1 {offsets = [0, 0], sizes = [8, 1], strides = [1, 1]} : vector<8x5xf32> to vector<8x1xf32>
    %4 = vector.broadcast %3 : vector<8x1xf32> to vector<8x12xf32>
    %5 = arith.mulf %2, %4 : vector<8x12xf32>
    %6 = vector.extract_strided_slice %0 {offsets = [0, 1], sizes = [8, 12], strides = [1, 1]} : vector<8x16xf32> to vector<8x12xf32>
    %7 = vector.extract_strided_slice %1 {offsets = [0, 1], sizes = [8, 1], strides = [1, 1]} : vector<8x5xf32> to vector<8x1xf32>
    %8 = vector.broadcast %7 : vector<8x1xf32> to vector<8x12xf32>
    %9 = arith.mulf %6, %8 : vector<8x12xf32>
    %10 = arith.addf %5, %9 : vector<8x12xf32>
    %11 = vector.extract_strided_slice %0 {offsets = [0, 2], sizes = [8, 12], strides = [1, 1]} : vector<8x16xf32> to vector<8x12xf32>
    %12 = vector.extract_strided_slice %1 {offsets = [0, 2], sizes = [8, 1], strides = [1, 1]} : vector<8x5xf32> to vector<8x1xf32>
    %13 = vector.broadcast %12 : vector<8x1xf32> to vector<8x12xf32>
    %14 = arith.mulf %11, %13 : vector<8x12xf32>
    %15 = arith.addf %10, %14 : vector<8x12xf32>
    %16 = vector.extract_strided_slice %0 {offsets = [0, 3], sizes = [8, 12], strides = [1, 1]} : vector<8x16xf32> to vector<8x12xf32>
    %17 = vector.extract_strided_slice %1 {offsets = [0, 3], sizes = [8, 1], strides = [1, 1]} : vector<8x5xf32> to vector<8x1xf32>
    %18 = vector.broadcast %17 : vector<8x1xf32> to vector<8x12xf32>
    %19 = arith.mulf %16, %18 : vector<8x12xf32>
    %20 = arith.addf %15, %19 : vector<8x12xf32>
    %21 = vector.extract_strided_slice %0 {offsets = [0, 4], sizes = [8, 12], strides = [1, 1]} : vector<8x16xf32> to vector<8x12xf32>
    %22 = vector.extract_strided_slice %1 {offsets = [0, 4], sizes = [8, 1], strides = [1, 1]} : vector<8x5xf32> to vector<8x1xf32>
    %23 = vector.broadcast %22 : vector<8x1xf32> to vector<8x12xf32>
    %24 = arith.mulf %21, %23 : vector<8x12xf32>
    %25 = arith.addf %20, %24 : vector<8x12xf32>
    %c0_3 = arith.constant 0 : index
    %c0_4 = arith.constant 0 : index
    %26 = vector.load %arg3[%c0_3, %c0_4] : memref<8x12xf32, #tpu.memory_space<vmem>>, vector<8x12xf32>
    tpu.vector_store %arg3[%c0_3, %c0_4], %25 {strides = array<i32>} : memref<8x12xf32, #tpu.memory_space<vmem>>, vector<8x12xf32>,
    return
  }
  func.func @transform_0(%arg0: i32) -> (i32, i32) {
    %c0_i32 = arith.constant 0 : i32
    %c0_i32_0 = arith.constant 0 : i32
    return %arg0, %c0_i32 : i32, i32
  }
  func.func @transform_1(%arg0: i32) -> (i32, i32) {
    %c0_i32 = arith.constant 0 : i32
    %c0_i32_0 = arith.constant 0 : i32
    return %arg0, %c0_i32 : i32, i32
  }
  func.func @transform_2(%arg0: i32) -> (i32, i32) {
    %c0_i32 = arith.constant 0 : i32
    %c0_i32_0 = arith.constant 0 : i32
    return %arg0, %c0_i32 : i32, i32
  }
}

</mosaic_0001>

<llo_original>
// kernel: tpu_custom_call.1
$region0: #{tpu_custom_call.1}
  #allocation0 [shape = 'u32[]', space=smem, size = 0x4, offset = 0x4, fixed_abs, tag = 'smem constant byte address 0x4 - core index']
  #allocation1 [shape = 'u32[72,128]{1,0:T(1,128)}', space=vmem, size = 0x9000, scoped, tag = 'internal scratch']
  %s0 = inlined_call_operand.hbm [shape: f32[8,16], index: 0, kind: input, shape index: {}]
  %s1 = inlined_call_operand.hbm [shape: f32[8,5], index: 1, kind: input, shape index: {}]
  %s2 = inlined_call_operand.hbm [shape: f32[8,12], index: 2, kind: output, shape index: {}]
  %s3 = sld [smem:[#allocation0]]
  $region26: #{tpu_custom_call.1} parent=0
    _
  %s5 = ssub.s32 1, %s3
  %s6 = scalar_select 0, %s5, %s3
  $region1: #{tpu_custom_call.1} parent=0
    #allocation2 [shape = 'u8[4096]{0}', space=vmem, size = 0x1000, scoped, tag = 'input window, operand 0, single buffered']
    #allocation3 [shape = 's32[1]{0}', space=sflag, size = 0x4, scoped, tag = 'scoped memory for tpu_custom_call.1']
    #allocation4 [shape = 's32[1]{0}', space=sflag, size = 0x4, scoped, tag = 'scoped memory for tpu_custom_call.1']
    #allocation5 [shape = 'u8[4096]{0}', space=vmem, size = 0x1000, scoped, tag = 'input window, operand 1, single buffered']
    #allocation6 [shape = 's32[1]{0}', space=sflag, size = 0x4, scoped, tag = 'scoped memory for tpu_custom_call.1']
    #allocation7 [shape = 'u8[4096]{0}', space=vmem, size = 0x1000, scoped, tag = 'output window, operand 0, single buffered']
    %7 = vsyncpa [#allocation3], 0
    %8 = vsyncpa [#allocation6], 0
    %9 = vsyncpa [#allocation4], 0
    // Predicated region
    $region2: #{tpu_custom_call.1} parent=1 // pred_check
      _
    $region3: #{tpu_custom_call.1} parent=1 // pred_check_branch
      %11 = sbr.rel (0) target = $region5
    $region4: #{tpu_custom_call.1} parent=1 // pred_region
      %13 = vsyncadd [#allocation3], 0
      %s15 = sshll.u32 %s0, 4
      %s16 = int_to_ptr.hbm [resolvable:$true] %s15
      %s17 = sshll.u32 [#allocation2], 4
      %s18 = int_to_ptr.vmem [resolvable:$true] %s17
      %20 = dma.hbm_to_vmem [thread:$0]  %s16, 128, %s18, [#allocation3]
    $region5: #{tpu_custom_call.1} parent=1 // pred_fallthru
      _
    // Predicated region
    $region6: #{tpu_custom_call.1} parent=1 // pred_check
      _
    $region7: #{tpu_custom_call.1} parent=1 // pred_check_branch
      %22 = sbr.rel (0) target = $region9
    $region8: #{tpu_custom_call.1} parent=1 // pred_region
      %24 = vsyncadd [#allocation6], 0
      %s26 = sshll.u32 %s1, 4
      %s27 = int_to_ptr.hbm [resolvable:$true] %s26
      %s28 = sshll.u32 [#allocation5], 4
      %s29 = int_to_ptr.vmem [resolvable:$true] %s28
      %31 = dma.hbm_to_vmem [thread:$0]  %s27, 128, %s29, [#allocation6]
    $region9: #{tpu_custom_call.1} parent=1 // pred_fallthru
      _
    // Predicated region
    $region10: #{tpu_custom_call.1} parent=1 // pred_check
      _
    $region11: #{tpu_custom_call.1} parent=1 // pred_check_branch
      %33 = sbr.rel (0) target = $region13
    $region12: #{tpu_custom_call.1} parent=1 // pred_region
      %35 = dma.done [#allocation3], 128
    $region13: #{tpu_custom_call.1} parent=1 // pred_fallthru
      _
    // Predicated region
    $region14: #{tpu_custom_call.1} parent=1 // pred_check
      _
    $region15: #{tpu_custom_call.1} parent=1 // pred_check_branch
      %37 = sbr.rel (0) target = $region17
    $region16: #{tpu_custom_call.1} parent=1 // pred_region
      %39 = dma.done [#allocation6], 128
    $region17: #{tpu_custom_call.1} parent=1 // pred_fallthru
      _
    %v40 = vld [vmem:[#allocation2] sm:$0xff]
    %v41 = vld [vmem:[#allocation5] sm:$0xff]
    %43 = vset.pattern.permute.xlu0 0
    %44 = vperm.xlu0 %43, %v41
    %v45 = vpop.permute.xlu0 %44
    %v47 = vmul.f32 %v40, %v45
    %48 = vset.pattern.permute.xlu0 1
    %49 = vperm.xlu0 %48, %v41
    %v50 = vpop.permute.xlu0 %49
    %v52 = vmul.f32 %v40, %v50
    %54 = vrot.lane.b32.xlu0 %v52, 127
    %v55 = vpop.permute.xlu0 %54
    %v57 = vadd.f32 %v47, %v55
    %58 = vset.pattern.permute.xlu0 2
    %59 = vperm.xlu0 %58, %v41
    %v60 = vpop.permute.xlu0 %59
    %v62 = vmul.f32 %v40, %v60
    %64 = vrot.lane.b32.xlu0 %v62, 126
    %v65 = vpop.permute.xlu0 %64
    %v67 = vadd.f32 %v57, %v65
    %68 = vset.pattern.permute.xlu0 3
    %69 = vperm.xlu0 %68, %v41
    %v70 = vpop.permute.xlu0 %69
    %v72 = vmul.f32 %v40, %v70
    %74 = vrot.lane.b32.xlu0 %v72, 125
    %v75 = vpop.permute.xlu0 %74
    %v77 = vadd.f32 %v67, %v75
    %78 = vset.pattern.permute.xlu0 4
    %79 = vperm.xlu0 %78, %v41
    %v80 = vpop.permute.xlu0 %79
    %v82 = vmul.f32 %v40, %v80
    %84 = vrot.lane.b32.xlu0 %v82, 124
    %v85 = vpop.permute.xlu0 %84
    %v87 = vadd.f32 %v77, %v85
    %vm88 = vcmask 97280
    %89 = vst.msk [vmem:[#allocation7] sm:$0xff] %vm88, %v87
    // Predicated region
    $region18: #{tpu_custom_call.1} parent=1 // pred_check
      _
    $region19: #{tpu_custom_call.1} parent=1 // pred_check_branch
      %91 = sbr.rel (0) target = $region21
    $region20: #{tpu_custom_call.1} parent=1 // pred_region
      %93 = vsyncadd [#allocation4], 0
      %s95 = sshll.u32 [#allocation7], 4
      %s96 = int_to_ptr.vmem [resolvable:$true] %s95
      %s97 = sshll.u32 %s2, 4
      %s98 = int_to_ptr.hbm [resolvable:$true] %s97
      %100 = dma.vmem_to_hbm [thread:$0]  %s96, 128, %s98, [#allocation4]
    $region21: #{tpu_custom_call.1} parent=1 // pred_fallthru
      _
    // Predicated region
    $region22: #{tpu_custom_call.1} parent=1 // pred_check
      _
    $region23: #{tpu_custom_call.1} parent=1 // pred_check_branch
      %102 = sbr.rel (0) target = $region25
    $region24: #{tpu_custom_call.1} parent=1 // pred_region
      %104 = dma.done [#allocation4], 128
    $region25: #{tpu_custom_call.1} parent=1 // pred_fallthru
      _
    %105 = vsyncpa [#allocation3], 1
    %106 = vsyncpa [#allocation6], 1
    %107 = vsyncpa [#allocation4], 1

</llo_original>
